<compile_context>
chip_gen: v7x
topology: tpu7x:2x2x1
jax: 0.10.0
libtpu: 0.0.40
codegen_flags: <defaults>
</compile_context>

<pallas_src>
import functools

import jax
import jax.numpy as jnp
from jax.experimental import pallas as pl
from jax.experimental.pallas import tpu as pltpu


def _layernorm_kernel(x_ref, g_ref, b_ref, o_ref, *, eps, feature):
    x = x_ref[...].astype(jnp.float32)            # (bb, f_eff)
    g = g_ref[...]                                # (1, f_eff) float32
    b = b_ref[...]                                # (1, f_eff) float32

    mean = jnp.sum(x, axis=-1, keepdims=True) * jnp.float32(1.0 / feature)

    d = x - mean
    if x.shape[-1] != feature:
        # Feature axis was zero-padded to a lane multiple: padded columns of
        # (x - mean) hold -mean, so exclude them from the centered sum.
        col = jax.lax.broadcasted_iota(jnp.int32, x.shape, dimension=1)
        d = jnp.where(col < feature, d, jnp.float32(0.0))

    # Two-pass (centered) variance: avoids the catastrophic cancellation of
    # sum(x^2) - n*mean^2; the extra VPU work hides under the HBM DMA.
    # Unbiased (ddof=1) to match torch.Tensor.std default.
    var = jnp.sum(d * d, axis=-1, keepdims=True) * jnp.float32(1.0 / (feature - 1))
    std = jnp.sqrt(var)

    # One exact reciprocal per row instead of a per-element divide; the
    # module divides by (std + eps), NOT sqrt(var + eps).
    inv = pl.reciprocal(std + jnp.float32(eps), approx=False)

    o_ref[...] = (g * (d * inv) + b).astype(o_ref.dtype)


def _round_up(v, m):
    return -(-v // m) * m


def _round_down(v, m):
    return (v // m) * m


def _tpu_vmem_capacity_bytes():
    try:
        return int(pltpu.get_tpu_info().vmem_capacity_bytes)
    except Exception:
        return 64 << 20   # conservative fallback (v7x per-TC physical VMEM)


def layer_norm(x, gamma, beta, *, eps=1e-6, block_batch=None):
    """x: [batch, feature]; gamma/beta: [feature]."""
    batch, feature = x.shape
    if feature < 2:
        # torch's unbiased std (ddof=1) is NaN for a single element.
        raise ValueError("LayerNorm kernel requires feature >= 2")

    in_bytes = jnp.dtype(x.dtype).itemsize
    out_bytes = in_bytes
    sub = max(8, 32 // in_bytes)          # dtype sublane multiple: 8/16/32

    phys_vmem = _tpu_vmem_capacity_bytes()
    # v7x exposes 64 MiB of VMEM per TensorCore and has 2 TCs per chip;
    # v5e / v6e expose 128 MiB and have a single TC.
    num_cores = 2 if phys_vmem <= (64 << 20) else 1

    # Pad the feature axis only when it is both narrow and not a multiple of
    # 128 (where masked partial-lane stores would dominate).  Everything else
    # goes through unpadded: a full-extent last dim is a legal block shape,
    # and skipping the pad removes a full HBM read+write of x and the output.
    pad_feature = (feature % 128 != 0) and (feature < 256)
    f_eff = _round_up(feature, 128) if pad_feature else feature

    if block_batch is None:
        # ~8 MiB of (input + output) per pipeline stage saturates HBM on all
        # three generations and keeps total VMEM well inside v7x's 64 MiB.
        target_stage = 8 << 20
        per_row_io = f_eff * (in_bytes + out_bytes)
        bb = max(sub, min(target_stage // per_row_io, 8192))
        bb = _round_down(bb, sub)
    else:
        bb = max(sub, _round_down(int(block_batch), sub))

    if bb >= batch:
        bb = batch                         # single block (full-dim exception)

    # v7x only: guarantee >= 2 grid steps per TensorCore so each core overlaps
    # its input DMA with compute/stores.  No-op on single-TC v5e/v6e, where a
    # forced split would only add per-step overhead.
    if num_cores == 2 and batch > sub:
        min_steps = 2 * num_cores
        if pl.cdiv(batch, bb) < min_steps:
            bb = max(sub, _round_down(batch // min_steps, sub))

    # Ragged final block: rows past `batch` are garbage-read and may produce
    # inf/NaN in intermediates, but their stores are masked, so results for
    # valid rows are unchanged.  Do NOT "fix" this with batch padding.
    grid = (pl.cdiv(batch, bb),)

    # gamma/beta stay in float32 (no double-rounding through x.dtype).
    g2 = gamma.astype(jnp.float32).reshape(1, feature)
    b2 = beta.astype(jnp.float32).reshape(1, feature)
    xp = x
    if pad_feature:
        pad = f_eff - feature
        xp = jnp.pad(x, ((0, 0), (0, pad)))
        g2 = jnp.pad(g2, ((0, 0), (0, pad)))
        b2 = jnp.pad(b2, ((0, 0), (0, pad)))

    # VMEM budget: double-buffered in/out tiles + f32 working copies of the
    # tile (up-cast x and the centered values) + gamma/beta + headroom,
    # capped below 3/4 of physical VMEM (valid on 64 MiB v7x and 128 MiB
    # v5e/v6e alike).
    io_bytes = 2 * bb * f_eff * (in_bytes + out_bytes)
    work_bytes = 2 * bb * f_eff * 4
    param_bytes = 4 * f_eff * 4
    vmem_limit = int(min(phys_vmem * 3 // 4,
                         max(io_bytes + work_bytes + param_bytes + (8 << 20),
                             32 << 20)))

    kernel = functools.partial(_layernorm_kernel, eps=eps, feature=feature)

    out = pl.pallas_call(
        kernel,
        out_shape=jax.ShapeDtypeStruct((batch, f_eff), x.dtype),
        grid_spec=pltpu.PrefetchScalarGridSpec(
            num_scalar_prefetch=0,
            grid=grid,
            in_specs=[
                pl.BlockSpec((bb, f_eff), lambda i: (i, 0)),
                pl.BlockSpec((1, f_eff), lambda i: (0, 0)),
                pl.BlockSpec((1, f_eff), lambda i: (0, 0)),
            ],
            out_specs=pl.BlockSpec((bb, f_eff), lambda i: (i, 0)),
        ),
        compiler_params=pltpu.CompilerParams(
            dimension_semantics=("parallel",),
            vmem_limit_bytes=vmem_limit,
        ),
    )(xp, g2, b2)

    if pad_feature:
        out = out[:, :feature]
    return out


if __name__ == "__main__":
    key = jax.random.PRNGKey(0)

    def reference(x, gamma, beta, eps=1e-6):
        mean = jnp.mean(x, axis=-1, keepdims=True)
        std = jnp.std(x, axis=-1, keepdims=True, ddof=1)
        return gamma * (x - mean) / (std + eps) + beta

    # [batch, feature] shapes exercising all wrapper paths:
    #   (8, 32)   narrow feature  -> lane-padded path
    #   (20, 384) 128-multiple    -> unpadded, ragged batch block (masked rows)
    #   (16, 300) wide non-128    -> unpadded, masked tail stores
    cases = [(8, 32), (20, 384), (16, 300)]

    for batch, feature in cases:
        kx, kg, kb, key = jax.random.split(key, 4)
        x = jax.random.normal(kx, (batch, feature), dtype=jnp.float32)
        gamma = 1.0 + 0.1 * jax.random.normal(kg, (feature,), dtype=jnp.float32)
        beta = 0.1 * jax.random.normal(kb, (feature,), dtype=jnp.float32)

        out = layer_norm(x, gamma, beta, eps=1e-6)
        jax.block_until_ready(out)

        ref = reference(x, gamma, beta, eps=1e-6)
        assert out.shape == (batch, feature), f"shape mismatch at {(batch, feature)}"
        assert jnp.allclose(out, ref, atol=1e-5, rtol=1e-5), (
            f"mismatch vs reference at {(batch, feature)}")

    print("KERNEL_OK")
</pallas_src>

<mosaic_0001>
module attributes {stable_mosaic.version = 11 : i64} {
  func.func @_layernorm_kernel(%arg0: i32, %arg1: memref<8x128xf32, #tpu.memory_space<vmem>>, %arg2: memref<1x128xf32, #tpu.memory_space<vmem>>, %arg3: memref<1x128xf32, #tpu.memory_space<vmem>>, %arg4: memref<8x128xf32, #tpu.memory_space<vmem>>) attributes {dimension_semantics = [#tpu.dimension_semantics<parallel>], iteration_bounds = array<i64: 1>, scalar_prefetch = 0 : i64, scratch_operands = 0 : i64, tpu.core_type = #tpu.core_type<tc>, window_params = [{transform_indices = @transform_0, window_bounds = array<i64: 8, 128>}, {pipeline_mode = #tpu.pipeline_mode<synchronous>, transform_indices = @transform_1, window_bounds = array<i64: 1, 128>}, {pipeline_mode = #tpu.pipeline_mode<synchronous>, transform_indices = @transform_2, window_bounds = array<i64: 1, 128>}, {transform_indices = @transform_3, window_bounds = array<i64: 8, 128>}]} {
    %c0 = arith.constant 0 : index
    %c0_0 = arith.constant 0 : index
    %0 = vector.load %arg1[%c0, %c0_0] : memref<8x128xf32, #tpu.memory_space<vmem>>, vector<8x128xf32>
    %c0_1 = arith.constant 0 : index
    %c0_2 = arith.constant 0 : index
    %1 = vector.load %arg2[%c0_1, %c0_2] : memref<1x128xf32, #tpu.memory_space<vmem>>, vector<1x128xf32>
    %c0_3 = arith.constant 0 : index
    %c0_4 = arith.constant 0 : index
    %2 = vector.load %arg3[%c0_3, %c0_4] : memref<1x128xf32, #tpu.memory_space<vmem>>, vector<1x128xf32>
    %cst = arith.constant dense<0.000000e+00> : vector<8xf32>
    %3 = vector.multi_reduction <add>, %0, %cst [1] : vector<8x128xf32> to vector<8xf32>
    %4 = vector.shape_cast %3 : vector<8xf32> to vector<8x1xf32>
    %cst_5 = arith.constant 3.125000e-02 : f32
    %5 = vector.broadcast %cst_5 : f32 to vector<8x1xf32>
    %6 = arith.mulf %4, %5 : vector<8x1xf32>
    %7 = vector.broadcast %6 : vector<8x1xf32> to vector<8x128xf32>
    %8 = arith.subf %0, %7 : vector<8x128xf32>
    %9 = tpu.iota {dimensions = array<i32: 1>} : vector<8x128xi32>
    %c32_i32 = arith.constant 32 : i32
    %10 = vector.broadcast %c32_i32 : i32 to vector<8x128xi32>
    %11 = arith.cmpi slt, %9, %10 : vector<8x128xi32>
    %cst_6 = arith.constant 0.000000e+00 : f32
    %12 = vector.broadcast %cst_6 : f32 to vector<8x128xf32>
    %13 = arith.select %11, %8, %12 : vector<8x128xi1>, vector<8x128xf32>
    %14 = arith.mulf %13, %13 : vector<8x128xf32>
    %cst_7 = arith.constant dense<0.000000e+00> : vector<8xf32>
    %15 = vector.multi_reduction <add>, %14, %cst_7 [1] : vector<8x128xf32> to vector<8xf32>
    %16 = vector.shape_cast %15 : vector<8xf32> to vector<8x1xf32>
    %cst_8 = arith.constant 0.0322580636 : f32
    %17 = vector.broadcast %cst_8 : f32 to vector<8x1xf32>
    %18 = arith.mulf %16, %17 : vector<8x1xf32>
    %19 = math.sqrt %18 : vector<8x1xf32>
    %cst_9 = arith.constant 9.99999997E-7 : f32
    %20 = vector.broadcast %cst_9 : f32 to vector<8x1xf32>
    %21 = arith.addf %19, %20 : vector<8x1xf32>
    %22 = tpu.reciprocal %21 : vector<8x1xf32> -> vector<8x1xf32>
    %23 = vector.broadcast %22 : vector<8x1xf32> to vector<8x128xf32>
    %24 = arith.mulf %13, %23 : vector<8x128xf32>
    %25 = vector.broadcast %1 : vector<1x128xf32> to vector<8x128xf32>
    %26 = arith.mulf %25, %24 : vector<8x128xf32>
    %27 = vector.broadcast %2 : vector<1x128xf32> to vector<8x128xf32>
    %28 = arith.addf %26, %27 : vector<8x128xf32>
    %c0_10 = arith.constant 0 : index
    %c0_11 = arith.constant 0 : index
    %29 = vector.load %arg4[%c0_10, %c0_11] : memref<8x128xf32, #tpu.memory_space<vmem>>, vector<8x128xf32>
    tpu.vector_store %arg4[%c0_10, %c0_11], %28 {strides = array<i32>} : memref<8x128xf32, #tpu.memory_space<vmem>>, vector<8x128xf32>,
    return
  }
  func.func @transform_0(%arg0: i32) -> (i32, i32) {
    %c0_i32 = arith.constant 0 : i32
    %c0_i32_0 = arith.constant 0 : i32
    return %arg0, %c0_i32 : i32, i32
  }
  func.func @transform_1(%arg0: i32) -> (i32, i32) {
    %c0_i32 = arith.constant 0 : i32
    %c0_i32_0 = arith.constant 0 : i32
    %c0_i32_1 = arith.constant 0 : i32
    return %c0_i32, %c0_i32_0 : i32, i32
  }
  func.func @transform_2(%arg0: i32) -> (i32, i32) {
    %c0_i32 = arith.constant 0 : i32
    %c0_i32_0 = arith.constant 0 : i32
    %c0_i32_1 = arith.constant 0 : i32
    return %c0_i32, %c0_i32_0 : i32, i32
  }
  func.func @transform_3(%arg0: i32) -> (i32, i32) {
    %c0_i32 = arith.constant 0 : i32
    %c0_i32_0 = arith.constant 0 : i32
    return %arg0, %c0_i32 : i32, i32
  }
}

</mosaic_0001>

<llo_original>
// kernel: tpu_custom_call.1
$region0: #{tpu_custom_call.1}
  #allocation0 [shape = 'u32[]', space=smem, size = 0x4, offset = 0x4, fixed_abs, tag = 'smem constant byte address 0x4 - core index']
  #allocation1 [shape = 'u32[144,128]{1,0:T(1,128)}', space=vmem, size = 0x12000, scoped, tag = 'internal scratch']
  %s0 = inlined_call_operand.hbm [shape: f32[8,128], index: 0, kind: input, shape index: {}]
  %s1 = inlined_call_operand.vmem [shape: f32[1,128], index: 1, kind: input, shape index: {}]
  %s2 = inlined_call_operand.vmem [shape: f32[1,128], index: 2, kind: input, shape index: {}]
  %s3 = inlined_call_operand.hbm [shape: f32[8,128], index: 3, kind: output, shape index: {}]
  %s4 = sld [smem:[#allocation0]]
  $region26: #{tpu_custom_call.1} parent=0
    _
  %s6 = ssub.s32 1, %s4
  %s7 = scalar_select 0, %s6, %s4
  $region1: #{tpu_custom_call.1} parent=0
    #allocation2 [shape = 'u8[4096]{0}', space=vmem, size = 0x1000, scoped, tag = 'input window, operand 0, single buffered']
    #allocation3 [shape = 's32[1]{0}', space=sflag, size = 0x4, scoped, tag = 'scoped memory for tpu_custom_call.1']
    #allocation4 [shape = 's32[1]{0}', space=sflag, size = 0x4, scoped, tag = 'scoped memory for tpu_custom_call.1']
    #allocation5 [shape = 'u8[4096]{0}', space=vmem, size = 0x1000, scoped, tag = 'output window, operand 0, single buffered']
    %8 = vsyncpa [#allocation3], 0
    %9 = vsyncpa [#allocation4], 0
    // Predicated region
    $region2: #{tpu_custom_call.1} parent=1 // pred_check
      _
    $region3: #{tpu_custom_call.1} parent=1 // pred_check_branch
      %11 = sbr.rel (0) target = $region5
    $region4: #{tpu_custom_call.1} parent=1 // pred_region
      %s13 = ssub.s32 128, 128
      %14 = vsyncadd [#allocation3], %s13
      %s16 = sshll.u32 [#allocation2], 4
      %s17 = int_to_ptr.vmem [resolvable:$true] %s16
      %19 = dma.hbm_to_vmem [thread:$0]  %s0, 128, %s17, [#allocation3]
    $region5: #{tpu_custom_call.1} parent=1 // pred_fallthru
      _
    // Predicated region
    $region6: #{tpu_custom_call.1} parent=1 // pred_check
      _
    $region7: #{tpu_custom_call.1} parent=1 // pred_check_branch
      %21 = sbr.rel (0) target = $region9
    $region8: #{tpu_custom_call.1} parent=1 // pred_region
      _
    $region9: #{tpu_custom_call.1} parent=1 // pred_fallthru
      _
    // Predicated region
    $region10: #{tpu_custom_call.1} parent=1 // pred_check
      _
    $region11: #{tpu_custom_call.1} parent=1 // pred_check_branch
      %23 = sbr.rel (0) target = $region13
    $region12: #{tpu_custom_call.1} parent=1 // pred_region
      _
    $region13: #{tpu_custom_call.1} parent=1 // pred_fallthru
      _
    // Predicated region
    $region14: #{tpu_custom_call.1} parent=1 // pred_check
      _
    $region15: #{tpu_custom_call.1} parent=1 // pred_check_branch
      %25 = sbr.rel (0) target = $region17
    $region16: #{tpu_custom_call.1} parent=1 // pred_region
      %26 = dma.done [#allocation3], 128
    $region17: #{tpu_custom_call.1} parent=1 // pred_fallthru
      _
    %v27 = vld [vmem:[#allocation2] sm:$0xff]
    %v28 = vld [vmem:[%s1] sm:$0x1]
    %v29 = vld [vmem:[%s2] sm:$0x1]
    %30 = vadd.xlane.f32.xlu0 %v27
    %v31 = vpop.xlane.xlu0 %30
    %v32 = vmul.f32 %v31, 0.03125
    %v33 = vsub.f32 %v27, %v32
    %v34 = vlaneseq
    %v35 = vand.u32 %v34, 127
    %vm36 = vcmp.lt.s32.totalorder %v35, 32
    %v37 = vsel %vm36, %v33, 0.0
    %v38 = vmul.f32 %v37, %v37
    %39 = vadd.xlane.f32.xlu0 %v38
    %v40 = vpop.xlane.xlu0 %39
    %v41 = vmul.f32 %v40, 0.032258064
    %v42 = vrsqrt.pop %v41
    %v43 = vmul.f32 %v41, %v42
    %vm44 = vcmp.eq.f32.partialorder %v41, inf
    %v45 = vsel %vm44, %v41, %v43
    %vm46 = vcmp.eq.f32.partialorder %v41, 0.0
    %v47 = vand.u32 %v41, 2147483648
    %v48 = vsel %vm46, %v47, %v45
    %v49 = vadd.f32 %v48, 1e-06
    %v50 = vrcp.pop %v49
    %v51 = vmul.f32 %v37, %v50
    %v53 = vlaneseq
    %v54 = vshrl.u32 %v53, 7
    %v55 = vsub.s32 0, %v54
    %v56 = vrot.slane %v28, %v55
    %v58 = vmul.f32 %v56, %v51
    %v60 = vlaneseq
    %v61 = vshrl.u32 %v60, 7
    %v62 = vsub.s32 0, %v61
    %v63 = vrot.slane %v29, %v62
    %v65 = vadd.f32 %v58, %v63
    %66 = vst [vmem:[#allocation5] sm:$0xff] %v65
    // Predicated region
    $region18: #{tpu_custom_call.1} parent=1 // pred_check
      _
    $region19: #{tpu_custom_call.1} parent=1 // pred_check_branch
      %68 = sbr.rel (0) target = $region21
    $region20: #{tpu_custom_call.1} parent=1 // pred_region
      %s70 = ssub.s32 128, 128
      %71 = vsyncadd [#allocation4], %s70
      %s73 = sshll.u32 [#allocation5], 4
      %s74 = int_to_ptr.vmem [resolvable:$true] %s73
      %76 = dma.vmem_to_hbm [thread:$0]  %s74, 128, %s3, [#allocation4]
    $region21: #{tpu_custom_call.1} parent=1 // pred_fallthru
      _
    // Predicated region
    $region22: #{tpu_custom_call.1} parent=1 // pred_check
      _
    $region23: #{tpu_custom_call.1} parent=1 // pred_check_branch
      %78 = sbr.rel (0) target = $region25
    $region24: #{tpu_custom_call.1} parent=1 // pred_region
      %79 = dma.done [#allocation4], 128
    $region25: #{tpu_custom_call.1} parent=1 // pred_fallthru
      _
    %80 = vsyncpa [#allocation3], 1
    %81 = vsyncpa [#allocation4], 1

</llo_original>
